<compile_context>
chip_gen: v6e
topology: v6e:2x2x1
jax: 0.10.0
libtpu: 0.0.40
codegen_flags: <defaults>
</compile_context>

<pallas_src>
import functools

import jax
import jax.numpy as jnp
from jax import lax
from jax.experimental import pallas as pl
from jax.experimental.pallas import tpu as pltpu


STATE_DIM = 11          # hard-coded in the module's __init__ (nn.Linear(11, 256))
HIDDEN = 256
ACTION_DIM = 1          # example action_dim for the continuous actor
HEAD_ROWS = 8           # 2*action_dim rounded up to one sublane group
STD_MIN, STD_MAX = 1e-6, 1.0
COMPUTE_DTYPE = jnp.bfloat16
LANE = 128
TILE_CAP = 2048


def _round_up(x, m):
    return ((x + m - 1) // m) * m


def _num_tensorcores():
    """Best-effort TC-per-chip count (2 on v7x-class chips, else 1)."""
    try:
        kind = jax.devices()[0].device_kind.lower()
    except Exception:  # pragma: no cover - defensive
        return 1
    return 2 if "v7" in kind else 1


def _choose_tiles(batch):
    """Pick (block_batch, padded_batch, steps) minimizing padding.

    block_batch is a multiple of 128 so the transposed (8, block_batch)
    output store is lane-dense/unmasked; on 2-TC chips we force >= 2 grid
    steps when there is enough work so the "parallel" axis uses both cores.
    """
    padded_min = _round_up(max(batch, 1), LANE)
    min_steps = 2 if (_num_tensorcores() >= 2 and padded_min >= 2 * LANE) else 1
    steps = max(min_steps, pl.cdiv(padded_min, TILE_CAP))
    block_batch = _round_up(pl.cdiv(padded_min, steps), LANE)
    padded = steps * block_batch
    return block_batch, padded, steps


def _actor_kernel(x_ref, w1_ref, b1_ref, w2_ref, b2_ref, wht_ref, bht_ref, o_ref):
    """Fused 3-layer MLP with a transposed compact (mu|std) head.

    o[8, TB] = W_head8[8,256] @ relu(relu(x@W1 + b1) @ W2 + b2)^T + b_head8
    (the contraction is expressed without any explicit transpose).
    """
    # bf16 operands on the MXU, f32 accumulation; elementwise math in f32.
    x = x_ref[...].astype(COMPUTE_DTYPE)                               # [TB, 11]
    h1 = jnp.dot(x, w1_ref[...], preferred_element_type=jnp.float32) + b1_ref[...]
    h1 = jnp.maximum(h1, 0.0)                                          # [TB, 256] f32
    h2 = jnp.dot(h1.astype(COMPUTE_DTYPE), w2_ref[...],
                 preferred_element_type=jnp.float32) + b2_ref[...]
    h2 = jnp.maximum(h2, 0.0)                                          # [TB, 256] f32
    # head^T: contract dim 1 of both operands -> [8, TB], no XLU transpose.
    head_t = lax.dot_general(
        wht_ref[...], h2.astype(COMPUTE_DTYPE),
        dimension_numbers=(((1,), (1,)), ((), ())),
        preferred_element_type=jnp.float32,
    )                                                                  # [8, TB] f32
    o_ref[...] = head_t + bht_ref[...]


@functools.partial(jax.jit, static_argnames=("action_dim",))
def actor_forward(state, params, *, action_dim=ACTION_DIM):
    """Forward pass of the Actor. Returns (mu, std) each of shape [B, action_dim]."""
    assert 2 * action_dim <= HEAD_ROWS, "compact head assumes 2*action_dim <= 8"
    w1, b1, w2, b2, wht, bht = params

    x = state.astype(jnp.float32)                     # torch: x.to(torch.float32)
    batch = x.shape[0]

    block_batch, padded, steps = _choose_tiles(batch)
    if padded != batch:
        x = jnp.pad(x, ((0, padded - batch), (0, 0)))
    grid = (steps,)

    flops = 2 * padded * (STATE_DIM * HIDDEN + HIDDEN * HIDDEN + HIDDEN * HEAD_ROWS)
    bytes_accessed = (
        padded * (STATE_DIM * 4 + HEAD_ROWS * 4)                           # x in, head^T out
        + (STATE_DIM * HIDDEN + HIDDEN * HIDDEN + HEAD_ROWS * HIDDEN) * 2  # bf16 weights
        + (HIDDEN + HIDDEN + HEAD_ROWS) * 4                                # f32 biases
    )

    head_t = pl.pallas_call(
        _actor_kernel,
        out_shape=jax.ShapeDtypeStruct((HEAD_ROWS, padded), jnp.float32),
        grid=grid,
        in_specs=[
            pl.BlockSpec((block_batch, STATE_DIM), lambda i: (i, 0)),   # x tile
            pl.BlockSpec((STATE_DIM, HIDDEN), lambda i: (0, 0)),        # W1
            pl.BlockSpec((1, HIDDEN), lambda i: (0, 0)),                # b1
            pl.BlockSpec((HIDDEN, HIDDEN), lambda i: (0, 0)),           # W2
            pl.BlockSpec((1, HIDDEN), lambda i: (0, 0)),                # b2
            pl.BlockSpec((HEAD_ROWS, HIDDEN), lambda i: (0, 0)),        # W_head^T (mu|std)
            pl.BlockSpec((HEAD_ROWS, 1), lambda i: (0, 0)),             # b_head^T
        ],
        out_specs=pl.BlockSpec((HEAD_ROWS, block_batch), lambda i: (0, i)),
        compiler_params=pltpu.CompilerParams(
            dimension_semantics=("parallel",),
        ),
        cost_estimate=pl.CostEstimate(
            flops=flops, transcendentals=0, bytes_accessed=bytes_accessed
        ),
    )(x, w1, b1, w2, b2, wht, bht)

    # Row slices of the tiny (8, padded) result -> negligible re-read traffic.
    mu = head_t[:action_dim, :batch].T
    std = jnp.clip(head_t[action_dim:2 * action_dim, :batch].T, STD_MIN, STD_MAX)
    return mu, std


def init_params(key, action_dim=ACTION_DIM, state_dim=STATE_DIM, hidden=HIDDEN):
    """PyTorch-Linear-style init, stored in kernel layout.

    W1/W2 are [in_features, out_features] bf16 (MXU operands); b1/b2 are
    [1, out_features] f32. The mu and std heads are fused and transposed into
    one [8, hidden] bf16 weight / [8, 1] f32 bias: rows [0:ad] = mu,
    rows [ad:2ad] = std, remaining rows zero.
    Note: weights are bf16 on the MXU (f32 accumulation), a documented
    deviation from PyTorch's full-f32 nn.Linear numerics (~1e-2 rel).
    """
    k = jax.random.split(key, 8)

    def u(kk, shape, fan_in):
        bound = 1.0 / jnp.sqrt(jnp.float32(fan_in))
        return jax.random.uniform(kk, shape, jnp.float32, -bound, bound)

    w1 = u(k[0], (state_dim, hidden), state_dim)
    b1 = u(k[1], (1, hidden), state_dim)
    w2 = u(k[2], (hidden, hidden), hidden)
    b2 = u(k[3], (hidden, hidden), hidden)[:1] * 0 + u(k[3], (1, hidden), hidden)
    w_mu = u(k[4], (action_dim, hidden), hidden)     # already transposed: [ad, hidden]
    b_mu = u(k[5], (action_dim, 1), hidden)
    w_std = u(k[6], (action_dim, hidden), hidden)
    b_std = u(k[7], (action_dim, 1), hidden)

    wht = jnp.zeros((HEAD_ROWS, hidden), jnp.float32)
    wht = wht.at[:action_dim].set(w_mu).at[action_dim:2 * action_dim].set(w_std)
    bht = jnp.zeros((HEAD_ROWS, 1), jnp.float32)
    bht = bht.at[:action_dim].set(b_mu).at[action_dim:2 * action_dim].set(b_std)

    return (
        w1.astype(COMPUTE_DTYPE), b1,
        w2.astype(COMPUTE_DTYPE), b2,
        wht.astype(COMPUTE_DTYPE), bht,
    )


def _reference(state, params, action_dim=ACTION_DIM):
    """Pure-JAX reference of the PyTorch forward (same bf16 operands / f32 acc)."""
    w1, b1, w2, b2, wht, bht = params
    x = state.astype(jnp.float32).astype(COMPUTE_DTYPE)
    h1 = jnp.maximum(jnp.dot(x, w1, preferred_element_type=jnp.float32) + b1, 0.0)
    h2 = jnp.maximum(
        jnp.dot(h1.astype(COMPUTE_DTYPE), w2, preferred_element_type=jnp.float32) + b2,
        0.0)
    head_t = lax.dot_general(
        wht.astype(COMPUTE_DTYPE), h2.astype(COMPUTE_DTYPE),
        dimension_numbers=(((1,), (1,)), ((), ())),
        preferred_element_type=jnp.float32,
    ) + bht
    mu = head_t[:action_dim].T
    std = jnp.clip(head_t[action_dim:2 * action_dim].T, STD_MIN, STD_MAX)
    return mu, std


# TODO(synk): Actor.sample_normal (Normal.rsample / log_prob + tanh squash) is a
# separate stochastic method outside forward(); not implemented as a kernel.


if __name__ == "__main__":
    key = jax.random.PRNGKey(0)
    kp, ks = jax.random.split(key, 2)

    batch = 2
    params = init_params(kp)
    state = jax.random.normal(ks, (batch, STATE_DIM), jnp.float32)

    mu, std = actor_forward(state, params)
    jax.block_until_ready((mu, std))

    mu_ref, std_ref = _reference(state, params)
    assert mu.shape == (batch, ACTION_DIM) and std.shape == (batch, ACTION_DIM)
    assert jnp.allclose(mu, mu_ref, atol=1e-2, rtol=1e-2)
    assert jnp.allclose(std, std_ref, atol=1e-2, rtol=1e-2)
    assert bool(jnp.all(std >= STD_MIN)) and bool(jnp.all(std <= STD_MAX))

    print("KERNEL_OK")
</pallas_src>

<mosaic_0001>
module attributes {stable_mosaic.version = 11 : i64} {
  func.func @_actor_kernel(%arg0: i32, %arg1: memref<128x11xf32, #tpu.memory_space<vmem>>, %arg2: memref<11x256xbf16, #tpu.memory_space<vmem>>, %arg3: memref<1x256xf32, #tpu.memory_space<vmem>>, %arg4: memref<256x256xbf16, #tpu.memory_space<vmem>>, %arg5: memref<1x256xf32, #tpu.memory_space<vmem>>, %arg6: memref<8x256xbf16, #tpu.memory_space<vmem>>, %arg7: memref<8x1xf32, #tpu.memory_space<vmem>>, %arg8: memref<8x128xf32, #tpu.memory_space<vmem>>) attributes {dimension_semantics = [#tpu.dimension_semantics<parallel>], iteration_bounds = array<i64: 1>, scalar_prefetch = 0 : i64, scratch_operands = 0 : i64, tpu.core_type = #tpu.core_type<tc>, window_params = [{transform_indices = @transform_0, window_bounds = array<i64: 128, 11>}, {pipeline_mode = #tpu.pipeline_mode<synchronous>, transform_indices = @transform_1, window_bounds = array<i64: 11, 256>}, {pipeline_mode = #tpu.pipeline_mode<synchronous>, transform_indices = @transform_2, window_bounds = array<i64: 1, 256>}, {pipeline_mode = #tpu.pipeline_mode<synchronous>, transform_indices = @transform_3, window_bounds = array<i64: 256, 256>}, {pipeline_mode = #tpu.pipeline_mode<synchronous>, transform_indices = @transform_4, window_bounds = array<i64: 1, 256>}, {pipeline_mode = #tpu.pipeline_mode<synchronous>, transform_indices = @transform_5, window_bounds = array<i64: 8, 256>}, {pipeline_mode = #tpu.pipeline_mode<synchronous>, transform_indices = @transform_6, window_bounds = array<i64: 8, 1>}, {transform_indices = @transform_7, window_bounds = array<i64: 8, 128>}]} {
    %c0 = arith.constant 0 : index
    %c0_0 = arith.constant 0 : index
    %0 = vector.load %arg1[%c0, %c0_0] : memref<128x11xf32, #tpu.memory_space<vmem>>, vector<128x11xf32>
    %1 = arith.truncf %0 : vector<128x11xf32> to vector<128x11xbf16>
    %c0_1 = arith.constant 0 : index
    %c0_2 = arith.constant 0 : index
    %2 = vector.load %arg2[%c0_1, %c0_2] : memref<11x256xbf16, #tpu.memory_space<vmem>>, vector<11x256xbf16>
    %cst = arith.constant dense<0.000000e+00> : vector<128x256xf32>
    %3 = tpu.matmul %1, %2, %cst {dimension_numbers = #tpu.dot_dimension_numbers<[1], [0], [0], [1], [0, 0, 1, 1], [], []>} : vector<128x11xbf16>, vector<11x256xbf16>, vector<128x256xf32> -> vector<128x256xf32>
    %c0_3 = arith.constant 0 : index
    %c0_4 = arith.constant 0 : index
    %4 = vector.load %arg3[%c0_3, %c0_4] : memref<1x256xf32, #tpu.memory_space<vmem>>, vector<1x256xf32>
    %5 = vector.broadcast %4 : vector<1x256xf32> to vector<128x256xf32>
    %6 = arith.addf %3, %5 : vector<128x256xf32>
    %cst_5 = arith.constant 0.000000e+00 : f32
    %7 = vector.broadcast %cst_5 : f32 to vector<128x256xf32>
    %8 = arith.maximumf %6, %7 : vector<128x256xf32>
    %9 = arith.truncf %8 : vector<128x256xf32> to vector<128x256xbf16>
    %c0_6 = arith.constant 0 : index
    %c0_7 = arith.constant 0 : index
    %10 = vector.load %arg4[%c0_6, %c0_7] : memref<256x256xbf16, #tpu.memory_space<vmem>>, vector<256x256xbf16>
    %cst_8 = arith.constant dense<0.000000e+00> : vector<128x256xf32>
    %11 = tpu.matmul %9, %10, %cst_8 {dimension_numbers = #tpu.dot_dimension_numbers<[1], [0], [0], [1], [0, 0, 1, 1], [], []>} : vector<128x256xbf16>, vector<256x256xbf16>, vector<128x256xf32> -> vector<128x256xf32>
    %c0_9 = arith.constant 0 : index
    %c0_10 = arith.constant 0 : index
    %12 = vector.load %arg5[%c0_9, %c0_10] : memref<1x256xf32, #tpu.memory_space<vmem>>, vector<1x256xf32>
    %13 = vector.broadcast %12 : vector<1x256xf32> to vector<128x256xf32>
    %14 = arith.addf %11, %13 : vector<128x256xf32>
    %cst_11 = arith.constant 0.000000e+00 : f32
    %15 = vector.broadcast %cst_11 : f32 to vector<128x256xf32>
    %16 = arith.maximumf %14, %15 : vector<128x256xf32>
    %c0_12 = arith.constant 0 : index
    %c0_13 = arith.constant 0 : index
    %17 = vector.load %arg6[%c0_12, %c0_13] : memref<8x256xbf16, #tpu.memory_space<vmem>>, vector<8x256xbf16>
    %18 = arith.truncf %16 : vector<128x256xf32> to vector<128x256xbf16>
    %cst_14 = arith.constant dense<0.000000e+00> : vector<8x128xf32>
    %19 = tpu.matmul %17, %18, %cst_14 {dimension_numbers = #tpu.dot_dimension_numbers<[1], [1], [0], [0], [0, 0, 1, 0], [], []>} : vector<8x256xbf16>, vector<128x256xbf16>, vector<8x128xf32> -> vector<8x128xf32>
    %c0_15 = arith.constant 0 : index
    %c0_16 = arith.constant 0 : index
    %20 = vector.load %arg7[%c0_15, %c0_16] : memref<8x1xf32, #tpu.memory_space<vmem>>, vector<8x1xf32>
    %21 = vector.broadcast %20 : vector<8x1xf32> to vector<8x128xf32>
    %22 = arith.addf %19, %21 : vector<8x128xf32>
    %c0_17 = arith.constant 0 : index
    %c0_18 = arith.constant 0 : index
    %23 = vector.load %arg8[%c0_17, %c0_18] : memref<8x128xf32, #tpu.memory_space<vmem>>, vector<8x128xf32>
    tpu.vector_store %arg8[%c0_17, %c0_18], %22 {strides = array<i32>} : memref<8x128xf32, #tpu.memory_space<vmem>>, vector<8x128xf32>,
    return
  }
  func.func @transform_0(%arg0: i32) -> (i32, i32) {
    %c0_i32 = arith.constant 0 : i32
    %c0_i32_0 = arith.constant 0 : i32
    return %arg0, %c0_i32 : i32, i32
  }
  func.func @transform_1(%arg0: i32) -> (i32, i32) {
    %c0_i32 = arith.constant 0 : i32
    %c0_i32_0 = arith.constant 0 : i32
    %c0_i32_1 = arith.constant 0 : i32
    return %c0_i32, %c0_i32_0 : i32, i32
  }
  func.func @transform_2(%arg0: i32) -> (i32, i32) {
    %c0_i32 = arith.constant 0 : i32
    %c0_i32_0 = arith.constant 0 : i32
    %c0_i32_1 = arith.constant 0 : i32
    return %c0_i32, %c0_i32_0 : i32, i32
  }
  func.func @transform_3(%arg0: i32) -> (i32, i32) {
    %c0_i32 = arith.constant 0 : i32
    %c0_i32_0 = arith.constant 0 : i32
    %c0_i32_1 = arith.constant 0 : i32
    return %c0_i32, %c0_i32_0 : i32, i32
  }
  func.func @transform_4(%arg0: i32) -> (i32, i32) {
    %c0_i32 = arith.constant 0 : i32
    %c0_i32_0 = arith.constant 0 : i32
    %c0_i32_1 = arith.constant 0 : i32
    return %c0_i32, %c0_i32_0 : i32, i32
  }
  func.func @transform_5(%arg0: i32) -> (i32, i32) {
    %c0_i32 = arith.constant 0 : i32
    %c0_i32_0 = arith.constant 0 : i32
    %c0_i32_1 = arith.constant 0 : i32
    return %c0_i32, %c0_i32_0 : i32, i32
  }
  func.func @transform_6(%arg0: i32) -> (i32, i32) {
    %c0_i32 = arith.constant 0 : i32
    %c0_i32_0 = arith.constant 0 : i32
    %c0_i32_1 = arith.constant 0 : i32
    return %c0_i32, %c0_i32_0 : i32, i32
  }
  func.func @transform_7(%arg0: i32) -> (i32, i32) {
    %c0_i32 = arith.constant 0 : i32
    %c0_i32_0 = arith.constant 0 : i32
    return %c0_i32, %arg0 : i32, i32
  }
}

</mosaic_0001>

<llo_original>
// kernel: actor_forward.1
$region0: #{actor_forward.1}
  #allocation0 [shape = 'u32[]', space=smem, size = 0x4, offset = 0x4, fixed_abs, tag = 'smem constant byte address 0x4 - core index']
  #allocation1 [shape = 'u32[144,128]{1,0:T(1,128)}', space=vmem, size = 0x12000, scoped, tag = 'internal scratch']
  %s0 = inlined_call_operand.vmem [shape: f32[128,11], index: 0, kind: input, shape index: {}]
  %s1 = inlined_call_operand.vmem [shape: bf16[11,256], index: 1, kind: input, shape index: {}]
  %s2 = inlined_call_operand.vmem [shape: f32[1,256], index: 2, kind: input, shape index: {}]
  %s3 = inlined_call_operand.hbm [shape: bf16[256,256], index: 3, kind: input, shape index: {}]
  %s4 = inlined_call_operand.vmem [shape: f32[1,256], index: 4, kind: input, shape index: {}]
  %s5 = inlined_call_operand.vmem [shape: bf16[8,256], index: 5, kind: input, shape index: {}]
  %s6 = inlined_call_operand.vmem [shape: f32[8,1], index: 6, kind: input, shape index: {}]
  %s7 = inlined_call_operand.vmem [shape: f32[8,128], index: 7, kind: output, shape index: {}]
  %s8 = sld [smem:[#allocation0]]
  $region42: #{actor_forward.1} parent=0
    _
  %s10 = ssub.s32 1, %s8
  %s11 = scalar_select 0, %s10, %s8
  $region1: #{actor_forward.1} parent=0
    #allocation2 [shape = 'u8[131072]{0}', space=vmem, size = 0x20000, scoped, tag = 'input window, operand 3, single buffered']
    #allocation3 [shape = 's32[1]{0}', space=sflag, size = 0x4, scoped, tag = 'scoped memory for actor_forward.1']
    %12 = vsyncpa [#allocation3], 0
    // Predicated region
    $region2: #{actor_forward.1} parent=1 // pred_check
      _
    $region3: #{actor_forward.1} parent=1 // pred_check_branch
      %14 = sbr.rel (0) target = $region5
    $region4: #{actor_forward.1} parent=1 // pred_region
      _
    $region5: #{actor_forward.1} parent=1 // pred_fallthru
      _
    // Predicated region
    $region6: #{actor_forward.1} parent=1 // pred_check
      _
    $region7: #{actor_forward.1} parent=1 // pred_check_branch
      %16 = sbr.rel (0) target = $region9
    $region8: #{actor_forward.1} parent=1 // pred_region
      _
    $region9: #{actor_forward.1} parent=1 // pred_fallthru
      _
    // Predicated region
    $region10: #{actor_forward.1} parent=1 // pred_check
      _
    $region11: #{actor_forward.1} parent=1 // pred_check_branch
      %18 = sbr.rel (0) target = $region13
    $region12: #{actor_forward.1} parent=1 // pred_region
      _
    $region13: #{actor_forward.1} parent=1 // pred_fallthru
      _
    // Predicated region
    $region14: #{actor_forward.1} parent=1 // pred_check
      _
    $region15: #{actor_forward.1} parent=1 // pred_check_branch
      %20 = sbr.rel (0) target = $region17
    $region16: #{actor_forward.1} parent=1 // pred_region
      %s22 = ssub.s32 4096, 4096
      %23 = vsyncadd [#allocation3], %s22
      %s24 = sshll.u32 [#allocation2], 4
      %s25 = int_to_ptr.vmem [resolvable:$true] %s24
      %30 = dma.hbm_to_vmem [thread:$0]  %s3, 4096, %s25, [#allocation3], 128, 128, 8
    $region17: #{actor_forward.1} parent=1 // pred_fallthru
      _
    // Predicated region
    $region18: #{actor_forward.1} parent=1 // pred_check
      _
    $region19: #{actor_forward.1} parent=1 // pred_check_branch
      %32 = sbr.rel (0) target = $region21
    $region20: #{actor_forward.1} parent=1 // pred_region
      _
    $region21: #{actor_forward.1} parent=1 // pred_fallthru
      _
    // Predicated region
    $region22: #{actor_forward.1} parent=1 // pred_check
      _
    $region23: #{actor_forward.1} parent=1 // pred_check_branch
      %34 = sbr.rel (0) target = $region25
    $region24: #{actor_forward.1} parent=1 // pred_region
      _
    $region25: #{actor_forward.1} parent=1 // pred_fallthru
      _
    // Predicated region
    $region26: #{actor_forward.1} parent=1 // pred_check
      _
    $region27: #{actor_forward.1} parent=1 // pred_check_branch
      %36 = sbr.rel (0) target = $region29
    $region28: #{actor_forward.1} parent=1 // pred_region
      _
    $region29: #{actor_forward.1} parent=1 // pred_fallthru
      _
    // Predicated region
    $region30: #{actor_forward.1} parent=1 // pred_check
      _
    $region31: #{actor_forward.1} parent=1 // pred_check_branch
      %38 = sbr.rel (0) target = $region33
    $region32: #{actor_forward.1} parent=1 // pred_region
      %39 = dma.done [#allocation3], 4096
    $region33: #{actor_forward.1} parent=1 // pred_fallthru
      _
    %v41 = vld [vmem:[%s0] sm:$0xff]
    %v42 = vld [vmem:[%s0 + $0x8] sm:$0xff]
    %v43 = vld [vmem:[%s0 + $0x10] sm:$0xff]
    %v44 = vld [vmem:[%s0 + $0x18] sm:$0xff]
    %v45 = vld [vmem:[%s0 + $0x20] sm:$0xff]
    %v46 = vld [vmem:[%s0 + $0x28] sm:$0xff]
    %v47 = vld [vmem:[%s0 + $0x30] sm:$0xff]
    %v48 = vld [vmem:[%s0 + $0x38] sm:$0xff]
    %v49 = vld [vmem:[%s0 + $0x40] sm:$0xff]
    %v50 = vld [vmem:[%s0 + $0x48] sm:$0xff]
    %v51 = vld [vmem:[%s0 + $0x50] sm:$0xff]
    %v52 = vld [vmem:[%s0 + $0x58] sm:$0xff]
    %v53 = vld [vmem:[%s0 + $0x60] sm:$0xff]
    %v54 = vld [vmem:[%s0 + $0x68] sm:$0xff]
    %v55 = vld [vmem:[%s0 + $0x70] sm:$0xff]
    %v56 = vld [vmem:[%s0 + $0x78] sm:$0xff]
    %v57 = vpack.c.bf16 %v42, %v41
    %v58 = vpack.c.bf16 %v44, %v43
    %v59 = vpack.c.bf16 %v46, %v45
    %v60 = vpack.c.bf16 %v48, %v47
    %v61 = vpack.c.bf16 %v50, %v49
    %v62 = vpack.c.bf16 %v52, %v51
    %v63 = vpack.c.bf16 %v54, %v53
    %v64 = vpack.c.bf16 %v56, %v55
    %v65 = vld [vmem:[%s1] sm:$0xff]
    %v66 = vld [vmem:[%s1 + $0x8] sm:$0x33]
    %v67 = vld [vmem:[%s2] sm:$0x3]
    %v69 = vlaneseq
    %v70 = vshrl.u32 %v69, 7
    %v71 = vsub.s32 0, %v70
    %v72 = vrot.slane %v67, %v71
    %v73 = vlaneseq
    %v74 = vshrl.u32 %v73, 7
    %v75 = vsub.s32 1, %v74
    %v76 = vrot.slane %v67, %v75
    %v81 = vunpack.c.l.b16 %v65
    %v82 = vunpack.c.h.b16 %v65
    %v83 = vunpack.c.l.b16 %v66
    %v84 = vunpack.c.h.b16 %v66
    %v85 = vpack.c.b16 %v83, %v81
    %v86 = vpack.c.b16 %v84, %v82
    %vm87 = vcmask 89088
    %v89 = vsel %vm87, %v57, 0
    %v92 = vsel %vm87, %v58, 0
    %v95 = vsel %vm87, %v59, 0
    %v98 = vsel %vm87, %v60, 0
    %v101 = vsel %vm87, %v61, 0
    %v104 = vsel %vm87, %v62, 0
    %v107 = vsel %vm87, %v63, 0
    %v110 = vsel %vm87, %v64, 0
    %vm112 = vcmask 1044480
    %vm113 = vcmask 1045504
    %v114 = vsel %vm112, 4294967295, 65535
    %v115 = vsel %vm113, %v114, 0
    %v117 = vand.u32 %v85, %v115
    %v120 = vand.u32 %v86, %v115
    %122 = vmatprep.subr.bf16.mxu0 0
    %123 = vmatpush1.bf16.msra.mxu0 0
    %124 = vmatprep.subr.bf16.mxu0 0
    %125 = vmatpush1.bf16.msra.mxu0 0
    %126 = vmatprep.subr.bf16.mxu0 0
    %127 = vmatpush1.bf16.msra.mxu0 0
    %128 = vmatprep.subr.bf16.mxu0 0
    %129 = vmatpush1.bf16.msra.mxu0 0
    %130 = vmatprep.subr.bf16.mxu0 0
    %131 = vmatpush1.bf16.msra.mxu0 0
    %132 = vmatprep.subr.bf16.mxu0 0
    %133 = vmatpush1.bf16.msra.mxu0 0
    %134 = vmatprep.subr.bf16.mxu0 0
    %135 = vmatpush1.bf16.msra.mxu0 0
    %136 = vmatprep.subr.bf16.mxu0 %v120
    %137 = vmatpush1.bf16.msra.mxu0 %v117
    %138 = vmatprep.subr.bf16.mxu0 0
    %139 = vmatpush2.bf16.msra.mxu0 0
    %140 = vmatprep.subr.bf16.mxu0 0
    %141 = vmatpush2.bf16.msra.mxu0 0
    %142 = vmatprep.subr.bf16.mxu0 0
    %143 = vmatpush2.bf16.msra.mxu0 0
    %144 = vmatprep.subr.bf16.mxu0 0
    %145 = vmatpush2.bf16.msra.mxu0 0
    %146 = vmatprep.subr.bf16.mxu0 0
    %147 = vmatpush2.bf16.msra.mxu0 0
    %148 = vmatprep.subr.bf16.mxu0 0
    %149 = vmatpush2.bf16.msra.mxu0 0
    %150 = vmatprep.subr.bf16.mxu0 0
    %151 = vmatpush2.bf16.msra.mxu0 0
    %152 = vmatprep.subr.bf16.mxu0 0
    %153 = vmatpush2.bf16.msra.mxu0 0
    %154 = vmatprep.mubr.bf16.mxu0 0
    %155 = vmatmul.mubr.bf16.gmra.mxu0 %v89
    %v156 = vpop.f32.mrf.mxu0
    %v157 = vadd.f32 %v72, %v156
    %v158 = vpop.f32.mrf.mxu0
    %v159 = vadd.f32 %v76, %v158
    %v160 = vpop.f32.mrf.mxu0
    %v161 = vadd.f32 %v72, %v160
    %v162 = vpop.f32.mrf.mxu0
    %v163 = vadd.f32 %v76, %v162
    %164 = vmatprep.mubr.bf16.mxu0 0
    %165 = vmatmul.mubr.bf16.gmra.mxu0 %v92
    %v166 = vpop.f32.mrf.mxu0
    %v167 = vadd.f32 %v72, %v166
    %v168 = vpop.f32.mrf.mxu0
    %v169 = vadd.f32 %v76, %v168
    %v170 = vpop.f32.mrf.mxu0
    %v171 = vadd.f32 %v72, %v170
    %v172 = vpop.f32.mrf.mxu0
    %v173 = vadd.f32 %v76, %v172
    %174 = vmatprep.mubr.bf16.mxu0 0
    %175 = vmatmul.mubr.bf16.gmra.mxu0 %v95
    %v176 = vpop.f32.mrf.mxu0
    %v177 = vadd.f32 %v72, %v176
    %v178 = vpop.f32.mrf.mxu0
    %v179 = vadd.f32 %v76, %v178
    %v180 = vpop.f32.mrf.mxu0
    %v181 = vadd.f32 %v72, %v180
    %v182 = vpop.f32.mrf.mxu0
    %v183 = vadd.f32 %v76, %v182
    %184 = vmatprep.mubr.bf16.mxu0 0
    %185 = vmatmul.mubr.bf16.gmra.mxu0 %v98
    %v186 = vpop.f32.mrf.mxu0
    %v187 = vadd.f32 %v72, %v186
    %v188 = vpop.f32.mrf.mxu0
    %v189 = vadd.f32 %v76, %v188
    %v190 = vpop.f32.mrf.mxu0
    %v191 = vadd.f32 %v72, %v190
    %v192 = vpop.f32.mrf.mxu0
    %v193 = vadd.f32 %v76, %v192
    %194 = vmatprep.mubr.bf16.mxu0 0
    %195 = vmatmul.mubr.bf16.gmra.mxu0 %v101
    %v196 = vpop.f32.mrf.mxu0
    %v197 = vadd.f32 %v72, %v196
    %v198 = vpop.f32.mrf.mxu0
    %v199 = vadd.f32 %v76, %v198
    %v200 = vpop.f32.mrf.mxu0
    %v201 = vadd.f32 %v72, %v200
    %v202 = vpop.f32.mrf.mxu0
    %v203 = vadd.f32 %v76, %v202
    %204 = vmatprep.mubr.bf16.mxu0 0
    %205 = vmatmul.mubr.bf16.gmra.mxu0 %v104
    %v206 = vpop.f32.mrf.mxu0
    %v207 = vadd.f32 %v72, %v206
    %v208 = vpop.f32.mrf.mxu0
    %v209 = vadd.f32 %v76, %v208
    %v210 = vpop.f32.mrf.mxu0
    %v211 = vadd.f32 %v72, %v210
    %v212 = vpop.f32.mrf.mxu0
    %v213 = vadd.f32 %v76, %v212
    %214 = vmatprep.mubr.bf16.mxu0 0
    %215 = vmatmul.mubr.bf16.gmra.mxu0 %v107
    %v216 = vpop.f32.mrf.mxu0
    %v217 = vadd.f32 %v72, %v216
    %v218 = vpop.f32.mrf.mxu0
    %v219 = vadd.f32 %v76, %v218
    %v220 = vpop.f32.mrf.mxu0
    %v221 = vadd.f32 %v72, %v220
    %v222 = vpop.f32.mrf.mxu0
    %v223 = vadd.f32 %v76, %v222
    %224 = vmatprep.mubr.bf16.mxu0 0
    %225 = vmatmul.mubr.bf16.gmra.mxu0 %v110
    %v226 = vpop.f32.mrf.mxu0
    %v227 = vadd.f32 %v72, %v226
    %v228 = vpop.f32.mrf.mxu0
    %v229 = vadd.f32 %v76, %v228
    %v230 = vpop.f32.mrf.mxu0
    %v231 = vadd.f32 %v72, %v230
    %v232 = vpop.f32.mrf.mxu0
    %v233 = vadd.f32 %v76, %v232
    %234 = vdwg.mxu0
    %v235 = vmax.f32 %v157, 0.0
    %v236 = vmax.f32 %v159, 0.0
    %v237 = vmax.f32 %v161, 0.0
    %v238 = vmax.f32 %v163, 0.0
    %v239 = vmax.f32 %v167, 0.0
    %v240 = vmax.f32 %v169, 0.0
    %v241 = vmax.f32 %v171, 0.0
    %v242 = vmax.f32 %v173, 0.0
    %v243 = vmax.f32 %v177, 0.0
    %v244 = vmax.f32 %v179, 0.0
    %v245 = vmax.f32 %v181, 0.0
    %v246 = vmax.f32 %v183, 0.0
    %v247 = vmax.f32 %v187, 0.0
    %v248 = vmax.f32 %v189, 0.0
    %v249 = vmax.f32 %v191, 0.0
    %v250 = vmax.f32 %v193, 0.0
    %v251 = vmax.f32 %v197, 0.0
    %v252 = vmax.f32 %v199, 0.0
    %v253 = vmax.f32 %v201, 0.0
    %v254 = vmax.f32 %v203, 0.0
    %v255 = vmax.f32 %v207, 0.0
    %v256 = vmax.f32 %v209, 0.0
    %v257 = vmax.f32 %v211, 0.0
    %v258 = vmax.f32 %v213, 0.0
    %v259 = vmax.f32 %v217, 0.0
    %v260 = vmax.f32 %v219, 0.0
    %v261 = vmax.f32 %v221, 0.0
    %v262 = vmax.f32 %v223, 0.0
    %v263 = vmax.f32 %v227, 0.0
    %v264 = vmax.f32 %v229, 0.0
    %v265 = vmax.f32 %v231, 0.0
    %v266 = vmax.f32 %v233, 0.0
    %v267 = vpack.c.bf16 %v237, %v235
    %v268 = vpack.c.bf16 %v238, %v236
    %v269 = vpack.c.bf16 %v241, %v239
    %v270 = vpack.c.bf16 %v242, %v240
    %v271 = vpack.c.bf16 %v245, %v243
    %v272 = vpack.c.bf16 %v246, %v244
    %v273 = vpack.c.bf16 %v249, %v247
    %v274 = vpack.c.bf16 %v250, %v248
    %v275 = vpack.c.bf16 %v253, %v251
    %v276 = vpack.c.bf16 %v254, %v252
    %v277 = vpack.c.bf16 %v257, %v255
    %v278 = vpack.c.bf16 %v258, %v256
    %v279 = vpack.c.bf16 %v261, %v259
    %v280 = vpack.c.bf16 %v262, %v260
    %v281 = vpack.c.bf16 %v265, %v263
    %v282 = vpack.c.bf16 %v266, %v264
    %v283 = vld [vmem:[#allocation2] sm:$0xff]
    %v284 = vld [vmem:[#allocation2 + $0x8] sm:$0xff]
    %v285 = vld [vmem:[#allocation2 + $0x10] sm:$0xff]
    %v286 = vld [vmem:[#allocation2 + $0x18] sm:$0xff]
    %v287 = vld [vmem:[#allocation2 + $0x20] sm:$0xff]
    %v288 = vld [vmem:[#allocation2 + $0x28] sm:$0xff]
    %v289 = vld [vmem:[#allocation2 + $0x30] sm:$0xff]
    %v290 = vld [vmem:[#allocation2 + $0x38] sm:$0xff]
    %v291 = vld [vmem:[#allocation2 + $0x40] sm:$0xff]
    %v292 = vld [vmem:[#allocation2 + $0x48] sm:$0xff]
    %v293 = vld [vmem:[#allocation2 + $0x50] sm:$0xff]
    %v294 = vld [vmem:[#allocation2 + $0x58] sm:$0xff]
    %v295 = vld [vmem:[#allocation2 + $0x60] sm:$0xff]
    %v296 = vld [vmem:[#allocation2 + $0x68] sm:$0xff]
    %v297 = vld [vmem:[#allocation2 + $0x70] sm:$0xff]
    %v298 = vld [vmem:[#allocation2 + $0x78] sm:$0xff]
    %v299 = vld [vmem:[#allocation2 + $0x80] sm:$0xff]
    %v300 = vld [vmem:[#allocation2 + $0x88] sm:$0xff]
    %v301 = vld [vmem:[#allocation2 + $0x90] sm:$0xff]
    %v302 = vld [vmem:[#allocation2 + $0x98] sm:$0xff]
    %v303 = vld [vmem:[#allocation2 + $0xa0] sm:$0xff]
    %v304 = vld [vmem:[#allocation2 + $0xa8] sm:$0xff]
    %v305 = vld [vmem:[#allocation2 + $0xb0] sm:$0xff]
    %v306 = vld [vmem:[#allocation2 + $0xb8] sm:$0xff]
    %v307 = vld [vmem:[#allocation2 + $0xc0] sm:$0xff]
    %v308 = vld [vmem:[#allocation2 + $0xc8] sm:$0xff]
    %v309 = vld [vmem:[#allocation2 + $0xd0] sm:$0xff]
    %v310 = vld [vmem:[#allocation2 + $0xd8] sm:$0xff]
    %v311 = vld [vmem:[#allocation2 + $0xe0] sm:$0xff]
    %v312 = vld [vmem:[#allocation2 + $0xe8] sm:$0xff]
    %v313 = vld [vmem:[#allocation2 + $0xf0] sm:$0xff]
    %v314 = vld [vmem:[#allocation2 + $0xf8] sm:$0xff]
    %v315 = vld [vmem:[%s4] sm:$0x3]
    %v317 = vlaneseq
    %v318 = vshrl.u32 %v317, 7
    %v319 = vsub.s32 0, %v318
    %v320 = vrot.slane %v315, %v319
    %v321 = vlaneseq
    %v322 = vshrl.u32 %v321, 7
    %v323 = vsub.s32 1, %v322
    %v324 = vrot.slane %v315, %v323
    %v359 = vunpack.c.l.b16 %v283
    %v360 = vunpack.c.h.b16 %v283
    %v361 = vunpack.c.l.b16 %v284
    %v362 = vunpack.c.h.b16 %v284
    %v363 = vunpack.c.l.b16 %v285
    %v364 = vunpack.c.h.b16 %v285
    %v365 = vunpack.c.l.b16 %v286
    %v366 = vunpack.c.h.b16 %v286
    %v367 = vunpack.c.l.b16 %v287
    %v368 = vunpack.c.h.b16 %v287
    %v369 = vunpack.c.l.b16 %v288
    %v370 = vunpack.c.h.b16 %v288
    %v371 = vunpack.c.l.b16 %v289
    %v372 = vunpack.c.h.b16 %v289
    %v373 = vunpack.c.l.b16 %v290
    %v374 = vunpack.c.h.b16 %v290
    %v375 = vunpack.c.l.b16 %v291
    %v376 = vunpack.c.h.b16 %v291
    %v377 = vunpack.c.l.b16 %v292
    %v378 = vunpack.c.h.b16 %v292
    %v379 = vunpack.c.l.b16 %v293
    %v380 = vunpack.c.h.b16 %v293
    %v381 = vunpack.c.l.b16 %v294
    %v382 = vunpack.c.h.b16 %v294
    %v383 = vunpack.c.l.b16 %v295
    %v384 = vunpack.c.h.b16 %v295
    %v385 = vunpack.c.l.b16 %v296
    %v386 = vunpack.c.h.b16 %v296
    %v387 = vunpack.c.l.b16 %v297
    %v388 = vunpack.c.h.b16 %v297
    %v389 = vunpack.c.l.b16 %v298
    %v390 = vunpack.c.h.b16 %v298
    %v391 = vunpack.c.l.b16 %v299
    %v392 = vunpack.c.h.b16 %v299
    %v393 = vunpack.c.l.b16 %v300
    %v394 = vunpack.c.h.b16 %v300
    %v395 = vunpack.c.l.b16 %v301
    %v396 = vunpack.c.h.b16 %v301
    %v397 = vunpack.c.l.b16 %v302
    %v398 = vunpack.c.h.b16 %v302
    %v399 = vunpack.c.l.b16 %v303
    %v400 = vunpack.c.h.b16 %v303
    %v401 = vunpack.c.l.b16 %v304
    %v402 = vunpack.c.h.b16 %v304
    %v403 = vunpack.c.l.b16 %v305
    %v404 = vunpack.c.h.b16 %v305
    %v405 = vunpack.c.l.b16 %v306
    %v406 = vunpack.c.h.b16 %v306
    %v407 = vunpack.c.l.b16 %v307
    %v408 = vunpack.c.h.b16 %v307
    %v409 = vunpack.c.l.b16 %v308
    %v410 = vunpack.c.h.b16 %v308
    %v411 = vunpack.c.l.b16 %v309
    %v412 = vunpack.c.h.b16 %v309
    %v413 = vunpack.c.l.b16 %v310
    %v414 = vunpack.c.h.b16 %v310
    %v415 = vunpack.c.l.b16 %v311
    %v416 = vunpack.c.h.b16 %v311
    %v417 = vunpack.c.l.b16 %v312
    %v418 = vunpack.c.h.b16 %v312
    %v419 = vunpack.c.l.b16 %v313
    %v420 = vunpack.c.h.b16 %v313
    %v421 = vunpack.c.l.b16 %v314
    %v422 = vunpack.c.h.b16 %v314
    %v423 = vpack.c.b16 %v361, %v359
    %v424 = vpack.c.b16 %v362, %v360
    %v425 = vpack.c.b16 %v365, %v363
    %v426 = vpack.c.b16 %v366, %v364
    %v427 = vpack.c.b16 %v369, %v367
    %v428 = vpack.c.b16 %v370, %v368
    %v429 = vpack.c.b16 %v373, %v371
    %v430 = vpack.c.b16 %v374, %v372
    %v431 = vpack.c.b16 %v377, %v375
    %v432 = vpack.c.b16 %v378, %v376
    %v433 = vpack.c.b16 %v381, %v379
    %v434 = vpack.c.b16 %v382, %v380
    %v435 = vpack.c.b16 %v385, %v383
    %v436 = vpack.c.b16 %v386, %v384
    %v437 = vpack.c.b16 %v389, %v387
    %v438 = vpack.c.b16 %v390, %v388
    %v439 = vpack.c.b16 %v393, %v391
    %v440 = vpack.c.b16 %v394, %v392
    %v441 = vpack.c.b16 %v397, %v395
    %v442 = vpack.c.b16 %v398, %v396
    %v443 = vpack.c.b16 %v401, %v399
    %v444 = vpack.c.b16 %v402, %v400
    %v445 = vpack.c.b16 %v405, %v403
    %v446 = vpack.c.b16 %v406, %v404
    %v447 = vpack.c.b16 %v409, %v407
    %v448 = vpack.c.b16 %v410, %v408
    %v449 = vpack.c.b16 %v413, %v411
    %v450 = vpack.c.b16 %v414, %v412
    %v451 = vpack.c.b16 %v417, %v415
    %v452 = vpack.c.b16 %v418, %v416
    %v453 = vpack.c.b16 %v421, %v419
    %v454 = vpack.c.b16 %v422, %v420
    %487 = vmatprep.subr.bf16.mxu0 %v438
    %488 = vmatpush1.bf16.msra.mxu0 %v437
    %489 = vmatprep.subr.bf16.mxu0 %v436
    %490 = vmatpush1.bf16.msra.mxu0 %v435
    %491 = vmatprep.subr.bf16.mxu0 %v434
    %492 = vmatpush1.bf16.msra.mxu0 %v433
    %493 = vmatprep.subr.bf16.mxu0 %v432
    %494 = vmatpush1.bf16.msra.mxu0 %v431
    %495 = vmatprep.subr.bf16.mxu0 %v430
    %496 = vmatpush1.bf16.msra.mxu0 %v429
    %497 = vmatprep.subr.bf16.mxu0 %v428
    %498 = vmatpush1.bf16.msra.mxu0 %v427
    %499 = vmatprep.subr.bf16.mxu0 %v426
    %500 = vmatpush1.bf16.msra.mxu0 %v425
    %501 = vmatprep.subr.bf16.mxu0 %v424
    %502 = vmatpush1.bf16.msra.mxu0 %v423
    %503 = vmatprep.subr.bf16.mxu0 %v454
    %504 = vmatpush2.bf16.msra.mxu0 %v453
    %505 = vmatprep.subr.bf16.mxu0 %v452
    %506 = vmatpush2.bf16.msra.mxu0 %v451
    %507 = vmatprep.subr.bf16.mxu0 %v450
    %508 = vmatpush2.bf16.msra.mxu0 %v449
    %509 = vmatprep.subr.bf16.mxu0 %v448
    %510 = vmatpush2.bf16.msra.mxu0 %v447
    %511 = vmatprep.subr.bf16.mxu0 %v446
    %512 = vmatpush2.bf16.msra.mxu0 %v445
    %513 = vmatprep.subr.bf16.mxu0 %v444
    %514 = vmatpush2.bf16.msra.mxu0 %v443
    %515 = vmatprep.subr.bf16.mxu0 %v442
    %516 = vmatpush2.bf16.msra.mxu0 %v441
    %517 = vmatprep.subr.bf16.mxu0 %v440
    %518 = vmatpush2.bf16.msra.mxu0 %v439
    %519 = vmatprep.mubr.bf16.mxu0 %v268
    %520 = vmatmul.mubr.bf16.gmra.mxu0 %v267
    %v521 = vpop.f32.mrf.mxu0
    %v522 = vadd.f32 %v320, %v521
    %v523 = vpop.f32.mrf.mxu0
    %v524 = vadd.f32 %v324, %v523
    %v525 = vpop.f32.mrf.mxu0
    %v526 = vadd.f32 %v320, %v525
    %v527 = vpop.f32.mrf.mxu0
    %v528 = vadd.f32 %v324, %v527
    %529 = vmatprep.mubr.bf16.mxu0 %v270
    %530 = vmatmul.mubr.bf16.gmra.mxu0 %v269
    %v531 = vpop.f32.mrf.mxu0
    %v532 = vadd.f32 %v320, %v531
    %v533 = vpop.f32.mrf.mxu0
    %v534 = vadd.f32 %v324, %v533
    %v535 = vpop.f32.mrf.mxu0
    %v536 = vadd.f32 %v320, %v535
    %v537 = vpop.f32.mrf.mxu0
    %v538 = vadd.f32 %v324, %v537
    %539 = vmatprep.mubr.bf16.mxu0 %v272
    %540 = vmatmul.mubr.bf16.gmra.mxu0 %v271
    %v541 = vpop.f32.mrf.mxu0
    %v542 = vadd.f32 %v320, %v541
    %v543 = vpop.f32.mrf.mxu0
    %v544 = vadd.f32 %v324, %v543
    %v545 = vpop.f32.mrf.mxu0
    %v546 = vadd.f32 %v320, %v545
    %v547 = vpop.f32.mrf.mxu0
    %v548 = vadd.f32 %v324, %v547
    %549 = vmatprep.mubr.bf16.mxu0 %v274
    %550 = vmatmul.mubr.bf16.gmra.mxu0 %v273
    %v551 = vpop.f32.mrf.mxu0
    %v552 = vadd.f32 %v320, %v551
    %v553 = vpop.f32.mrf.mxu0
    %v554 = vadd.f32 %v324, %v553
    %v555 = vpop.f32.mrf.mxu0
    %v556 = vadd.f32 %v320, %v555
    %v557 = vpop.f32.mrf.mxu0
    %v558 = vadd.f32 %v324, %v557
    %559 = vmatprep.mubr.bf16.mxu0 %v276
    %560 = vmatmul.mubr.bf16.gmra.mxu0 %v275
    %v561 = vpop.f32.mrf.mxu0
    %v562 = vadd.f32 %v320, %v561
    %v563 = vpop.f32.mrf.mxu0
    %v564 = vadd.f32 %v324, %v563
    %v565 = vpop.f32.mrf.mxu0
    %v566 = vadd.f32 %v320, %v565
    %v567 = vpop.f32.mrf.mxu0
    %v568 = vadd.f32 %v324, %v567
    %569 = vmatprep.mubr.bf16.mxu0 %v278
    %570 = vmatmul.mubr.bf16.gmra.mxu0 %v277
    %v571 = vpop.f32.mrf.mxu0
    %v572 = vadd.f32 %v320, %v571
    %v573 = vpop.f32.mrf.mxu0
    %v574 = vadd.f32 %v324, %v573
    %v575 = vpop.f32.mrf.mxu0
    %v576 = vadd.f32 %v320, %v575
    %v577 = vpop.f32.mrf.mxu0
    %v578 = vadd.f32 %v324, %v577
    %579 = vmatprep.mubr.bf16.mxu0 %v280
    %580 = vmatmul.mubr.bf16.gmra.mxu0 %v279
    %v581 = vpop.f32.mrf.mxu0
    %v582 = vadd.f32 %v320, %v581
    %v583 = vpop.f32.mrf.mxu0
    %v584 = vadd.f32 %v324, %v583
    %v585 = vpop.f32.mrf.mxu0
    %v586 = vadd.f32 %v320, %v585
    %v587 = vpop.f32.mrf.mxu0
    %v588 = vadd.f32 %v324, %v587
    %589 = vmatprep.mubr.bf16.mxu0 %v282
    %590 = vmatmul.mubr.bf16.gmra.mxu0 %v281
    %v591 = vpop.f32.mrf.mxu0
    %v592 = vadd.f32 %v320, %v591
    %v593 = vpop.f32.mrf.mxu0
    %v594 = vadd.f32 %v324, %v593
    %v595 = vpop.f32.mrf.mxu0
    %v596 = vadd.f32 %v320, %v595
    %v597 = vpop.f32.mrf.mxu0
    %v598 = vadd.f32 %v324, %v597
    %599 = vdwg.mxu0
    %v600 = vmax.f32 %v522, 0.0
    %v601 = vmax.f32 %v524, 0.0
    %v602 = vmax.f32 %v526, 0.0
    %v603 = vmax.f32 %v528, 0.0
    %v604 = vmax.f32 %v532, 0.0
    %v605 = vmax.f32 %v534, 0.0
    %v606 = vmax.f32 %v536, 0.0
    %v607 = vmax.f32 %v538, 0.0
    %v608 = vmax.f32 %v542, 0.0
    %v609 = vmax.f32 %v544, 0.0
    %v610 = vmax.f32 %v546, 0.0
    %v611 = vmax.f32 %v548, 0.0
    %v612 = vmax.f32 %v552, 0.0
    %v613 = vmax.f32 %v554, 0.0
    %v614 = vmax.f32 %v556, 0.0
    %v615 = vmax.f32 %v558, 0.0
    %v616 = vmax.f32 %v562, 0.0
    %v617 = vmax.f32 %v564, 0.0
    %v618 = vmax.f32 %v566, 0.0
    %v619 = vmax.f32 %v568, 0.0
    %v620 = vmax.f32 %v572, 0.0
    %v621 = vmax.f32 %v574, 0.0
    %v622 = vmax.f32 %v576, 0.0
    %v623 = vmax.f32 %v578, 0.0
    %v624 = vmax.f32 %v582, 0.0
    %v625 = vmax.f32 %v584, 0.0
    %v626 = vmax.f32 %v586, 0.0
    %v627 = vmax.f32 %v588, 0.0
    %v628 = vmax.f32 %v592, 0.0
    %v629 = vmax.f32 %v594, 0.0
    %v630 = vmax.f32 %v596, 0.0
    %v631 = vmax.f32 %v598, 0.0
    %v632 = vld [vmem:[%s5] sm:$0xff]
    %v633 = vpack.c.bf16 %v602, %v600
    %v634 = vpack.c.bf16 %v603, %v601
    %v635 = vpack.c.bf16 %v606, %v604
    %v636 = vpack.c.bf16 %v607, %v605
    %v637 = vpack.c.bf16 %v610, %v608
    %v638 = vpack.c.bf16 %v611, %v609
    %v639 = vpack.c.bf16 %v614, %v612
    %v640 = vpack.c.bf16 %v615, %v613
    %v641 = vpack.c.bf16 %v618, %v616
    %v642 = vpack.c.bf16 %v619, %v617
    %v643 = vpack.c.bf16 %v622, %v620
    %v644 = vpack.c.bf16 %v623, %v621
    %v645 = vpack.c.bf16 %v626, %v624
    %v646 = vpack.c.bf16 %v627, %v625
    %v647 = vpack.c.bf16 %v630, %v628
    %v648 = vpack.c.bf16 %v631, %v629
    %v649 = vld [vmem:[%s6] sm:$0xff]
    %651 = vset.pattern.permute.xlu0 0
    %652 = vperm.xlu0 %651, %v649
    %v653 = vpop.permute.xlu0 %652
    %v656 = vunpack.c.l.b16 %v632
    %v657 = vunpack.c.h.b16 %v632
    %v658 = vpack.c.b16 %v656, %v656
    %v659 = vpack.c.b16 %v657, %v657
    %662 = vmatprep.subr.bf16.mxu0 %v648
    %663 = vmatpush1.bf16.xpose.msra.mxu0 %v647
    %664 = vmatprep.subr.bf16.mxu0 %v646
    %665 = vmatpush1.bf16.xpose.msra.mxu0 %v645
    %666 = vmatprep.subr.bf16.mxu0 %v644
    %667 = vmatpush1.bf16.xpose.msra.mxu0 %v643
    %668 = vmatprep.subr.bf16.mxu0 %v642
    %669 = vmatpush1.bf16.xpose.msra.mxu0 %v641
    %670 = vmatprep.subr.bf16.mxu0 %v640
    %671 = vmatpush1.bf16.xpose.msra.mxu0 %v639
    %672 = vmatprep.subr.bf16.mxu0 %v638
    %673 = vmatpush1.bf16.xpose.msra.mxu0 %v637
    %674 = vmatprep.subr.bf16.mxu0 %v636
    %675 = vmatpush1.bf16.xpose.msra.mxu0 %v635
    %676 = vmatprep.subr.bf16.mxu0 %v634
    %677 = vmatpush1.bf16.xpose.msra.mxu0 %v633
    %678 = vmatprep.subr.bf16.mxu0 0
    %679 = vmatpush2.bf16.xpose.msra.mxu0 0
    %680 = vmatprep.subr.bf16.mxu0 0
    %681 = vmatpush2.bf16.xpose.msra.mxu0 0
    %682 = vmatprep.subr.bf16.mxu0 0
    %683 = vmatpush2.bf16.xpose.msra.mxu0 0
    %684 = vmatprep.subr.bf16.mxu0 0
    %685 = vmatpush2.bf16.xpose.msra.mxu0 0
    %686 = vmatprep.subr.bf16.mxu0 0
    %687 = vmatpush2.bf16.xpose.msra.mxu0 0
    %688 = vmatprep.subr.bf16.mxu0 0
    %689 = vmatpush2.bf16.xpose.msra.mxu0 0
    %690 = vmatprep.subr.bf16.mxu0 0
    %691 = vmatpush2.bf16.xpose.msra.mxu0 0
    %692 = vmatprep.subr.bf16.mxu0 0
    %693 = vmatpush2.bf16.xpose.msra.mxu0 0
    %694 = vmatprep.mubr.bf16.mxu0 %v659
    %695 = vmatmul.mubr.bf16.gmra.mxu0 %v658
    %v696 = vpop.f32.mrf.mxu0
    %v697 = vadd.f32 %v653, %v696
    %v698 = vpop.f32.mrf.mxu0
    %v699 = vpop.f32.mrf.mxu0
    %v700 = vpop.f32.mrf.mxu0
    %701 = vdwg.mxu0
    %702 = vst [vmem:[%s7] sm:$0xff] %v697
    // Predicated region
    $region34: #{actor_forward.1} parent=1 // pred_check
      _
    $region35: #{actor_forward.1} parent=1 // pred_check_branch
      %704 = sbr.rel (0) target = $region37
    $region36: #{actor_forward.1} parent=1 // pred_region
      _
    $region37: #{actor_forward.1} parent=1 // pred_fallthru
      _
    // Predicated region
    $region38: #{actor_forward.1} parent=1 // pred_check
      _
    $region39: #{actor_forward.1} parent=1 // pred_check_branch
      %706 = sbr.rel (0) target = $region41
    $region40: #{actor_forward.1} parent=1 // pred_region
      _
    $region41: #{actor_forward.1} parent=1 // pred_fallthru
      _
    %707 = vsyncpa [#allocation3], 1

</llo_original>
